<compile_context>
chip_gen: v7x
topology: tpu7x:2x2x1
jax: 0.10.0
libtpu: 0.0.40
codegen_flags: <defaults>
</compile_context>

<pallas_src>
import jax
import jax.numpy as jnp
from jax.experimental import pallas as pl
from jax.experimental.pallas import tpu as pltpu


DEFAULT_TILE_B = 2048  # rows of x per grid step (multiple of 8)


def _round_up(n, m):
    return ((n + m - 1) // m) * m


def _cdiv(n, m):
    return (n + m - 1) // m


def qnetwork_kernel(x_ref, w1_ref, b1_ref, w2_ref, b2_ref, w3_ref, b3_ref, o_ref):
    cd = w1_ref.dtype  # MXU operand dtype (f32 or bf16), fixed by prepare_params
    # In-kernel cast of the x tile: keeps the pallas_call input f32 (no extra
    # wrapper HBM pass); the VPU cast hides under the MXU push cadence.
    x = x_ref[...].astype(cd)
    # fc1 + relu (f32 accumulation, f32 bias added post-accumulation)
    h1 = jnp.dot(x, w1_ref[...], preferred_element_type=jnp.float32)
    h1 = jnp.maximum(h1 + b1_ref[...], 0.0)
    # fc2 + relu
    h2 = jnp.dot(h1.astype(cd), w2_ref[...], preferred_element_type=jnp.float32)
    h2 = jnp.maximum(h2 + b2_ref[...], 0.0)
    # fc3 (no activation)
    out = jnp.dot(h2.astype(cd), w3_ref[...], preferred_element_type=jnp.float32)
    o_ref[...] = (out + b3_ref[...]).astype(o_ref.dtype)


def prepare_params(params, compute_dtype=jnp.bfloat16):
    """Cast the weights to the MXU compute dtype ONCE (cache outside the RL
    step). Biases stay float32; they are added after the f32 accumulation."""
    p = dict(params)
    for k in ("w1", "w2", "w3"):
        p[k] = params[k].astype(compute_dtype)
    return p


def qnetwork_forward(x, params, *, tile_b=DEFAULT_TILE_B):
    """x: [B, state_size] float32.
    params: weights stored transposed as [in, out] (optionally pre-cast to bf16
    via prepare_params), biases [1, out] float32. Returns [B, num_actions] f32.
    """
    w1, b1, w2, b2, w3, b3 = (params["w1"], params["b1"], params["w2"],
                              params["b2"], params["w3"], params["b3"])
    B, state_size = x.shape
    num_actions = w3.shape[1]

    # Batch tile: multiple of 8 sublanes (x is f32 at the call boundary), no
    # larger than the sublane-rounded batch, and capped so the grid has >= 2
    # steps when possible so the "parallel" batch axis can be sharded across
    # both TensorCores on v7x.
    tile_b = max(8, min(tile_b, _round_up(B, 8)))
    tile_b = _round_up(tile_b, 8)
    if B >= 16:
        tile_b = min(tile_b, _round_up(_cdiv(B, 2), 8))

    grid = (_cdiv(B, tile_b),)

    # Full-shape, grid-invariant blocks for the tiny weights/biases: DMA'd once,
    # VMEM-resident across all batch tiles.
    resident = lambda a: pl.BlockSpec(a.shape, lambda i: (0,) * a.ndim)

    # No batch padding: Pallas masks the partial edge block (out-of-bounds rows
    # compute garbage that is never written back), so no pad / slice HBM passes.
    return pl.pallas_call(
        qnetwork_kernel,
        out_shape=jax.ShapeDtypeStruct((B, num_actions), jnp.float32),
        grid=grid,
        in_specs=[
            pl.BlockSpec((tile_b, state_size), lambda i: (i, 0)),  # x: batch-tiled
            resident(w1), resident(b1),
            resident(w2), resident(b2),
            resident(w3), resident(b3),
        ],
        out_specs=pl.BlockSpec((tile_b, num_actions), lambda i: (i, 0)),
        compiler_params=pltpu.CompilerParams(
            dimension_semantics=("parallel",),  # shard batch across TCs on v7x
        ),
    )(x, w1, b1, w2, b2, w3, b3)


def init_params(key, state_size, num_actions, hidden_size=64):
    """Kaiming-normal weights (fan_in, like nn.init.kaiming_normal_), biases
    use PyTorch Linear default U(-1/sqrt(fan_in), 1/sqrt(fan_in))."""
    k1, k2, k3, kb1, kb2, kb3 = jax.random.split(key, 6)

    def kaiming(k, fan_in, fan_out):
        std = (2.0 / fan_in) ** 0.5
        # torch stores (out, in); we store transposed (in, out) for the kernel.
        return std * jax.random.normal(k, (fan_in, fan_out), dtype=jnp.float32)

    def bias(k, fan_in, fan_out):
        bound = 1.0 / (fan_in ** 0.5)
        return jax.random.uniform(k, (1, fan_out), dtype=jnp.float32,
                                  minval=-bound, maxval=bound)

    return {
        "w1": kaiming(k1, state_size, hidden_size),
        "b1": bias(kb1, state_size, hidden_size),
        "w2": kaiming(k2, hidden_size, hidden_size),
        "b2": bias(kb2, hidden_size, hidden_size),
        "w3": kaiming(k3, hidden_size, num_actions),
        "b3": bias(kb3, hidden_size, num_actions),
    }


def reference_forward(x, params):
    h1 = jnp.maximum(x @ params["w1"] + params["b1"], 0.0)
    h2 = jnp.maximum(h1 @ params["w2"] + params["b2"], 0.0)
    return h2 @ params["w3"] + params["b3"]


if __name__ == "__main__":
    key = jax.random.PRNGKey(0)
    kx, kp = jax.random.split(key)

    batch, state_size, num_actions, hidden_size = 8, 16, 4, 64
    x = jax.random.normal(kx, (batch, state_size), dtype=jnp.float32)
    params = init_params(kp, state_size, num_actions, hidden_size)

    ref = reference_forward(x, params)

    # f32 MXU path (tight check): weights left f32, x cast in-kernel is a no-op.
    out_f32 = jax.block_until_ready(qnetwork_forward(x, params))
    assert out_f32.shape == (batch, num_actions)
    assert jnp.allclose(out_f32, ref, atol=1e-4, rtol=1e-4), "f32 mismatch vs reference"

    # bf16 MXU path: weights cached in bf16 once, x cast in-kernel, f32 accumulation.
    params_bf16 = prepare_params(params, jnp.bfloat16)
    out_bf16 = jax.block_until_ready(qnetwork_forward(x, params_bf16))
    assert out_bf16.shape == (batch, num_actions)
    assert jnp.allclose(out_bf16, ref, atol=1.5e-1, rtol=5e-2), "bf16 mismatch vs reference"

    # Multi-tile, non-divisible batch: exercises the partial edge block (no pad)
    # and a >=2-step grid (small tile so the grid has several steps).
    big_batch = 100
    xb = jax.random.normal(kx, (big_batch, state_size), dtype=jnp.float32)
    out_big = jax.block_until_ready(qnetwork_forward(xb, params, tile_b=32))
    ref_big = reference_forward(xb, params)
    assert out_big.shape == (big_batch, num_actions)
    assert jnp.allclose(out_big, ref_big, atol=1e-4, rtol=1e-4), "tiled mismatch vs reference"

    print("KERNEL_OK")
</pallas_src>

<mosaic_0001>
module attributes {stable_mosaic.version = 11 : i64} {
  func.func @qnetwork_kernel(%arg0: i32, %arg1: memref<8x16xf32, #tpu.memory_space<vmem>>, %arg2: memref<16x64xf32, #tpu.memory_space<vmem>>, %arg3: memref<1x64xf32, #tpu.memory_space<vmem>>, %arg4: memref<64x64xf32, #tpu.memory_space<vmem>>, %arg5: memref<1x64xf32, #tpu.memory_space<vmem>>, %arg6: memref<64x4xf32, #tpu.memory_space<vmem>>, %arg7: memref<1x4xf32, #tpu.memory_space<vmem>>, %arg8: memref<8x4xf32, #tpu.memory_space<vmem>>) attributes {dimension_semantics = [#tpu.dimension_semantics<parallel>], iteration_bounds = array<i64: 1>, scalar_prefetch = 0 : i64, scratch_operands = 0 : i64, tpu.core_type = #tpu.core_type<tc>, window_params = [{transform_indices = @transform_0, window_bounds = array<i64: 8, 16>}, {pipeline_mode = #tpu.pipeline_mode<synchronous>, transform_indices = @transform_1, window_bounds = array<i64: 16, 64>}, {pipeline_mode = #tpu.pipeline_mode<synchronous>, transform_indices = @transform_2, window_bounds = array<i64: 1, 64>}, {pipeline_mode = #tpu.pipeline_mode<synchronous>, transform_indices = @transform_3, window_bounds = array<i64: 64, 64>}, {pipeline_mode = #tpu.pipeline_mode<synchronous>, transform_indices = @transform_4, window_bounds = array<i64: 1, 64>}, {pipeline_mode = #tpu.pipeline_mode<synchronous>, transform_indices = @transform_5, window_bounds = array<i64: 64, 4>}, {pipeline_mode = #tpu.pipeline_mode<synchronous>, transform_indices = @transform_6, window_bounds = array<i64: 1, 4>}, {transform_indices = @transform_7, window_bounds = array<i64: 8, 4>}]} {
    %c0 = arith.constant 0 : index
    %c0_0 = arith.constant 0 : index
    %0 = vector.load %arg1[%c0, %c0_0] : memref<8x16xf32, #tpu.memory_space<vmem>>, vector<8x16xf32>
    %c0_1 = arith.constant 0 : index
    %c0_2 = arith.constant 0 : index
    %1 = vector.load %arg2[%c0_1, %c0_2] : memref<16x64xf32, #tpu.memory_space<vmem>>, vector<16x64xf32>
    %cst = arith.constant dense<0.000000e+00> : vector<8x64xf32>
    %2 = tpu.matmul %0, %1, %cst {dimension_numbers = #tpu.dot_dimension_numbers<[1], [0], [0], [1], [0, 0, 1, 1], [], []>} : vector<8x16xf32>, vector<16x64xf32>, vector<8x64xf32> -> vector<8x64xf32>
    %c0_3 = arith.constant 0 : index
    %c0_4 = arith.constant 0 : index
    %3 = vector.load %arg3[%c0_3, %c0_4] : memref<1x64xf32, #tpu.memory_space<vmem>>, vector<1x64xf32>
    %4 = vector.broadcast %3 : vector<1x64xf32> to vector<8x64xf32>
    %5 = arith.addf %2, %4 : vector<8x64xf32>
    %cst_5 = arith.constant 0.000000e+00 : f32
    %6 = vector.broadcast %cst_5 : f32 to vector<8x64xf32>
    %7 = arith.maximumf %5, %6 : vector<8x64xf32>
    %c0_6 = arith.constant 0 : index
    %c0_7 = arith.constant 0 : index
    %8 = vector.load %arg4[%c0_6, %c0_7] : memref<64x64xf32, #tpu.memory_space<vmem>>, vector<64x64xf32>
    %cst_8 = arith.constant dense<0.000000e+00> : vector<8x64xf32>
    %9 = tpu.matmul %7, %8, %cst_8 {dimension_numbers = #tpu.dot_dimension_numbers<[1], [0], [0], [1], [0, 0, 1, 1], [], []>} : vector<8x64xf32>, vector<64x64xf32>, vector<8x64xf32> -> vector<8x64xf32>
    %c0_9 = arith.constant 0 : index
    %c0_10 = arith.constant 0 : index
    %10 = vector.load %arg5[%c0_9, %c0_10] : memref<1x64xf32, #tpu.memory_space<vmem>>, vector<1x64xf32>
    %11 = vector.broadcast %10 : vector<1x64xf32> to vector<8x64xf32>
    %12 = arith.addf %9, %11 : vector<8x64xf32>
    %cst_11 = arith.constant 0.000000e+00 : f32
    %13 = vector.broadcast %cst_11 : f32 to vector<8x64xf32>
    %14 = arith.maximumf %12, %13 : vector<8x64xf32>
    %c0_12 = arith.constant 0 : index
    %c0_13 = arith.constant 0 : index
    %15 = vector.load %arg6[%c0_12, %c0_13] : memref<64x4xf32, #tpu.memory_space<vmem>>, vector<64x4xf32>
    %cst_14 = arith.constant dense<0.000000e+00> : vector<8x4xf32>
    %16 = tpu.matmul %14, %15, %cst_14 {dimension_numbers = #tpu.dot_dimension_numbers<[1], [0], [0], [1], [0, 0, 1, 1], [], []>} : vector<8x64xf32>, vector<64x4xf32>, vector<8x4xf32> -> vector<8x4xf32>
    %c0_15 = arith.constant 0 : index
    %c0_16 = arith.constant 0 : index
    %17 = vector.load %arg7[%c0_15, %c0_16] : memref<1x4xf32, #tpu.memory_space<vmem>>, vector<1x4xf32>
    %18 = vector.broadcast %17 : vector<1x4xf32> to vector<8x4xf32>
    %19 = arith.addf %16, %18 : vector<8x4xf32>
    %c0_17 = arith.constant 0 : index
    %c0_18 = arith.constant 0 : index
    %20 = vector.load %arg8[%c0_17, %c0_18] : memref<8x4xf32, #tpu.memory_space<vmem>>, vector<8x4xf32>
    tpu.vector_store %arg8[%c0_17, %c0_18], %19 {strides = array<i32>} : memref<8x4xf32, #tpu.memory_space<vmem>>, vector<8x4xf32>,
    return
  }
  func.func @transform_0(%arg0: i32) -> (i32, i32) {
    %c0_i32 = arith.constant 0 : i32
    %c0_i32_0 = arith.constant 0 : i32
    return %arg0, %c0_i32 : i32, i32
  }
  func.func @transform_1(%arg0: i32) -> (i32, i32) {
    %c0_i32 = arith.constant 0 : i32
    %c0_i32_0 = arith.constant 0 : i32
    %c0_i32_1 = arith.constant 0 : i32
    return %c0_i32, %c0_i32_0 : i32, i32
  }
  func.func @transform_2(%arg0: i32) -> (i32, i32) {
    %c0_i32 = arith.constant 0 : i32
    %c0_i32_0 = arith.constant 0 : i32
    %c0_i32_1 = arith.constant 0 : i32
    return %c0_i32, %c0_i32_0 : i32, i32
  }
  func.func @transform_3(%arg0: i32) -> (i32, i32) {
    %c0_i32 = arith.constant 0 : i32
    %c0_i32_0 = arith.constant 0 : i32
    %c0_i32_1 = arith.constant 0 : i32
    return %c0_i32, %c0_i32_0 : i32, i32
  }
  func.func @transform_4(%arg0: i32) -> (i32, i32) {
    %c0_i32 = arith.constant 0 : i32
    %c0_i32_0 = arith.constant 0 : i32
    %c0_i32_1 = arith.constant 0 : i32
    return %c0_i32, %c0_i32_0 : i32, i32
  }
  func.func @transform_5(%arg0: i32) -> (i32, i32) {
    %c0_i32 = arith.constant 0 : i32
    %c0_i32_0 = arith.constant 0 : i32
    %c0_i32_1 = arith.constant 0 : i32
    return %c0_i32, %c0_i32_0 : i32, i32
  }
  func.func @transform_6(%arg0: i32) -> (i32, i32) {
    %c0_i32 = arith.constant 0 : i32
    %c0_i32_0 = arith.constant 0 : i32
    %c0_i32_1 = arith.constant 0 : i32
    return %c0_i32, %c0_i32_0 : i32, i32
  }
  func.func @transform_7(%arg0: i32) -> (i32, i32) {
    %c0_i32 = arith.constant 0 : i32
    %c0_i32_0 = arith.constant 0 : i32
    return %arg0, %c0_i32 : i32, i32
  }
}

</mosaic_0001>

<llo_original>
// kernel: tpu_custom_call.1
$region0: #{tpu_custom_call.1}
  #allocation0 [shape = 'u32[]', space=smem, size = 0x4, offset = 0x4, fixed_abs, tag = 'smem constant byte address 0x4 - core index']
  #allocation1 [shape = 'u32[144,128]{1,0:T(1,128)}', space=vmem, size = 0x12000, scoped, tag = 'internal scratch']
  %s0 = inlined_call_operand.vmem [shape: f32[8,16], index: 0, kind: input, shape index: {}]
  %s1 = inlined_call_operand.hbm [shape: f32[16,64], index: 1, kind: input, shape index: {}]
  %s2 = inlined_call_operand.vmem [shape: f32[1,64], index: 2, kind: input, shape index: {}]
  %s3 = inlined_call_operand.vmem [shape: f32[64,64], index: 3, kind: input, shape index: {}]
  %s4 = inlined_call_operand.vmem [shape: f32[1,64], index: 4, kind: input, shape index: {}]
  %s5 = inlined_call_operand.vmem [shape: f32[64,4], index: 5, kind: input, shape index: {}]
  %s6 = inlined_call_operand.vmem [shape: f32[1,4], index: 6, kind: input, shape index: {}]
  %s7 = inlined_call_operand.vmem [shape: f32[8,4], index: 7, kind: output, shape index: {}]
  %s8 = sld [smem:[#allocation0]]
  $region42: #{tpu_custom_call.1} parent=0
    _
  %s10 = ssub.s32 1, %s8
  %s11 = scalar_select 0, %s10, %s8
  $region1: #{tpu_custom_call.1} parent=0
    #allocation2 [shape = 'u8[8192]{0}', space=vmem, size = 0x2000, scoped, tag = 'input window, operand 1, single buffered']
    #allocation3 [shape = 's32[1]{0}', space=sflag, size = 0x4, scoped, tag = 'scoped memory for tpu_custom_call.1']
    %12 = vsyncpa [#allocation3], 0
    // Predicated region
    $region2: #{tpu_custom_call.1} parent=1 // pred_check
      _
    $region3: #{tpu_custom_call.1} parent=1 // pred_check_branch
      %14 = sbr.rel (0) target = $region5
    $region4: #{tpu_custom_call.1} parent=1 // pred_region
      _
    $region5: #{tpu_custom_call.1} parent=1 // pred_fallthru
      _
    // Predicated region
    $region6: #{tpu_custom_call.1} parent=1 // pred_check
      _
    $region7: #{tpu_custom_call.1} parent=1 // pred_check_branch
      %16 = sbr.rel (0) target = $region9
    $region8: #{tpu_custom_call.1} parent=1 // pred_region
      %s18 = ssub.s32 256, 256
      %19 = vsyncadd [#allocation3], %s18
      %s20 = sshll.u32 [#allocation2], 4
      %s21 = int_to_ptr.vmem [resolvable:$true] %s20
      %26 = dma.hbm_to_vmem [thread:$0]  %s1, 256, %s21, [#allocation3], 128, 128, 8
    $region9: #{tpu_custom_call.1} parent=1 // pred_fallthru
      _
    // Predicated region
    $region10: #{tpu_custom_call.1} parent=1 // pred_check
      _
    $region11: #{tpu_custom_call.1} parent=1 // pred_check_branch
      %28 = sbr.rel (0) target = $region13
    $region12: #{tpu_custom_call.1} parent=1 // pred_region
      _
    $region13: #{tpu_custom_call.1} parent=1 // pred_fallthru
      _
    // Predicated region
    $region14: #{tpu_custom_call.1} parent=1 // pred_check
      _
    $region15: #{tpu_custom_call.1} parent=1 // pred_check_branch
      %30 = sbr.rel (0) target = $region17
    $region16: #{tpu_custom_call.1} parent=1 // pred_region
      _
    $region17: #{tpu_custom_call.1} parent=1 // pred_fallthru
      _
    // Predicated region
    $region18: #{tpu_custom_call.1} parent=1 // pred_check
      _
    $region19: #{tpu_custom_call.1} parent=1 // pred_check_branch
      %32 = sbr.rel (0) target = $region21
    $region20: #{tpu_custom_call.1} parent=1 // pred_region
      _
    $region21: #{tpu_custom_call.1} parent=1 // pred_fallthru
      _
    // Predicated region
    $region22: #{tpu_custom_call.1} parent=1 // pred_check
      _
    $region23: #{tpu_custom_call.1} parent=1 // pred_check_branch
      %34 = sbr.rel (0) target = $region25
    $region24: #{tpu_custom_call.1} parent=1 // pred_region
      _
    $region25: #{tpu_custom_call.1} parent=1 // pred_fallthru
      _
    // Predicated region
    $region26: #{tpu_custom_call.1} parent=1 // pred_check
      _
    $region27: #{tpu_custom_call.1} parent=1 // pred_check_branch
      %36 = sbr.rel (0) target = $region29
    $region28: #{tpu_custom_call.1} parent=1 // pred_region
      _
    $region29: #{tpu_custom_call.1} parent=1 // pred_fallthru
      _
    // Predicated region
    $region30: #{tpu_custom_call.1} parent=1 // pred_check
      _
    $region31: #{tpu_custom_call.1} parent=1 // pred_check_branch
      %38 = sbr.rel (0) target = $region33
    $region32: #{tpu_custom_call.1} parent=1 // pred_region
      %39 = dma.done [#allocation3], 256
    $region33: #{tpu_custom_call.1} parent=1 // pred_fallthru
      _
    %v40 = vld [vmem:[%s0] sm:$0xff]
    %v41 = vld [vmem:[#allocation2] sm:$0xff]
    %v42 = vld [vmem:[#allocation2 + $0x8] sm:$0xff]
    %v43 = vld [vmem:[%s2] sm:$0x1]
    %v45 = vlaneseq
    %v46 = vshrl.u32 %v45, 7
    %v47 = vsub.s32 0, %v46
    %v48 = vrot.slane %v43, %v47
    %vm50 = vcmask 130048
    %v52 = vsel %vm50, %v40, 0
    %54 = vmatprep.subr.mxu0 0.0
    %55 = vmatpush1.msra.mxu0 %v41
    %56 = vmatprep.subr.mxu0 0.0
    %57 = vmatpush1.msra.mxu0 %v42
    %58 = vmatprep.subr.mxu0 0.0
    %59 = vmatpush1.msra.mxu0 0.0
    %60 = vmatprep.subr.mxu0 0.0
    %61 = vmatpush1.msra.mxu0 0.0
    %62 = vmatprep.subr.mxu0 0.0
    %63 = vmatpush1.msra.mxu0 0.0
    %64 = vmatprep.subr.mxu0 0.0
    %65 = vmatpush1.msra.mxu0 0.0
    %66 = vmatprep.subr.mxu0 0.0
    %67 = vmatpush1.msra.mxu0 0.0
    %68 = vmatprep.subr.mxu0 0.0
    %69 = vmatpush1.msra.mxu0 0.0
    %70 = vmatprep.subr.mxu0 0.0
    %71 = vmatpush1.msra.mxu0 0.0
    %72 = vmatprep.subr.mxu0 0.0
    %73 = vmatpush1.msra.mxu0 0.0
    %74 = vmatprep.subr.mxu0 0.0
    %75 = vmatpush1.msra.mxu0 0.0
    %76 = vmatprep.subr.mxu0 0.0
    %77 = vmatpush1.msra.mxu0 0.0
    %78 = vmatprep.subr.mxu0 0.0
    %79 = vmatpush1.msra.mxu0 0.0
    %80 = vmatprep.subr.mxu0 0.0
    %81 = vmatpush1.msra.mxu0 0.0
    %82 = vmatprep.subr.mxu0 0.0
    %83 = vmatpush1.msra.mxu0 0.0
    %84 = vmatprep.subr.mxu0 0.0
    %85 = vmatpush1.msra.mxu0 0.0
    %86 = vmatprep.subr.mxu0 0.0
    %87 = vmatpush1.msra.mxu0 0.0
    %88 = vmatprep.subr.mxu0 0.0
    %89 = vmatpush1.msra.mxu0 0.0
    %90 = vmatprep.subr.mxu0 0.0
    %91 = vmatpush1.msra.mxu0 0.0
    %92 = vmatprep.subr.mxu0 0.0
    %93 = vmatpush1.msra.mxu0 0.0
    %94 = vmatprep.subr.mxu0 0.0
    %95 = vmatpush1.msra.mxu0 0.0
    %96 = vmatprep.subr.mxu0 0.0
    %97 = vmatpush1.msra.mxu0 0.0
    %98 = vmatprep.subr.mxu0 0.0
    %99 = vmatpush1.msra.mxu0 0.0
    %100 = vmatprep.subr.mxu0 0.0
    %101 = vmatpush1.msra.mxu0 0.0
    %102 = vmatprep.subr.mxu0 0.0
    %103 = vmatpush1.msra.mxu0 0.0
    %104 = vmatprep.subr.mxu0 0.0
    %105 = vmatpush1.msra.mxu0 0.0
    %106 = vmatprep.subr.mxu0 0.0
    %107 = vmatpush1.msra.mxu0 0.0
    %108 = vmatprep.subr.mxu0 0.0
    %109 = vmatpush1.msra.mxu0 0.0
    %110 = vmatprep.subr.mxu0 0.0
    %111 = vmatpush1.msra.mxu0 0.0
    %112 = vmatprep.subr.mxu0 0.0
    %113 = vmatpush1.msra.mxu0 0.0
    %114 = vmatprep.subr.mxu0 0.0
    %115 = vmatpush1.msra.mxu0 0.0
    %116 = vmatprep.subr.mxu0 0.0
    %117 = vmatpush1.msra.mxu0 0.0
    %118 = vmatprep.mubr.f32.mxu0 0.0
    %119 = vmatmul.mubr.f32.gmra.mrb[0].mxu0 %v52
    %v120 = vpop.f32.mrb[0].mxu0
    %v121 = vadd.f32 %v48, %v120
    %v122 = vpop.f32.mrb[0].mxu0
    %123 = vdwg.mxu0
    %v124 = vmax.f32 %v121, 0.0
    %v125 = vld [vmem:[%s3] sm:$0xff]
    %v126 = vld [vmem:[%s3 + $0x8] sm:$0xff]
    %v127 = vld [vmem:[%s3 + $0x10] sm:$0xff]
    %v128 = vld [vmem:[%s3 + $0x18] sm:$0xff]
    %v129 = vld [vmem:[%s3 + $0x20] sm:$0xff]
    %v130 = vld [vmem:[%s3 + $0x28] sm:$0xff]
    %v131 = vld [vmem:[%s3 + $0x30] sm:$0xff]
    %v132 = vld [vmem:[%s3 + $0x38] sm:$0xff]
    %v133 = vld [vmem:[%s4] sm:$0x1]
    %v135 = vlaneseq
    %v136 = vshrl.u32 %v135, 7
    %v137 = vsub.s32 0, %v136
    %v138 = vrot.slane %v133, %v137
    %vm140 = vcmask 523264
    %v142 = vsel %vm140, %v124, 0
    %144 = vmatprep.subr.mxu0 0.0
    %145 = vmatpush1.msra.mxu0 %v125
    %146 = vmatprep.subr.mxu0 0.0
    %147 = vmatpush1.msra.mxu0 %v126
    %148 = vmatprep.subr.mxu0 0.0
    %149 = vmatpush1.msra.mxu0 %v127
    %150 = vmatprep.subr.mxu0 0.0
    %151 = vmatpush1.msra.mxu0 %v128
    %152 = vmatprep.subr.mxu0 0.0
    %153 = vmatpush1.msra.mxu0 %v129
    %154 = vmatprep.subr.mxu0 0.0
    %155 = vmatpush1.msra.mxu0 %v130
    %156 = vmatprep.subr.mxu0 0.0
    %157 = vmatpush1.msra.mxu0 %v131
    %158 = vmatprep.subr.mxu0 0.0
    %159 = vmatpush1.msra.mxu0 %v132
    %160 = vmatprep.subr.mxu0 0.0
    %161 = vmatpush1.msra.mxu0 0.0
    %162 = vmatprep.subr.mxu0 0.0
    %163 = vmatpush1.msra.mxu0 0.0
    %164 = vmatprep.subr.mxu0 0.0
    %165 = vmatpush1.msra.mxu0 0.0
    %166 = vmatprep.subr.mxu0 0.0
    %167 = vmatpush1.msra.mxu0 0.0
    %168 = vmatprep.subr.mxu0 0.0
    %169 = vmatpush1.msra.mxu0 0.0
    %170 = vmatprep.subr.mxu0 0.0
    %171 = vmatpush1.msra.mxu0 0.0
    %172 = vmatprep.subr.mxu0 0.0
    %173 = vmatpush1.msra.mxu0 0.0
    %174 = vmatprep.subr.mxu0 0.0
    %175 = vmatpush1.msra.mxu0 0.0
    %176 = vmatprep.subr.mxu0 0.0
    %177 = vmatpush1.msra.mxu0 0.0
    %178 = vmatprep.subr.mxu0 0.0
    %179 = vmatpush1.msra.mxu0 0.0
    %180 = vmatprep.subr.mxu0 0.0
    %181 = vmatpush1.msra.mxu0 0.0
    %182 = vmatprep.subr.mxu0 0.0
    %183 = vmatpush1.msra.mxu0 0.0
    %184 = vmatprep.subr.mxu0 0.0
    %185 = vmatpush1.msra.mxu0 0.0
    %186 = vmatprep.subr.mxu0 0.0
    %187 = vmatpush1.msra.mxu0 0.0
    %188 = vmatprep.subr.mxu0 0.0
    %189 = vmatpush1.msra.mxu0 0.0
    %190 = vmatprep.subr.mxu0 0.0
    %191 = vmatpush1.msra.mxu0 0.0
    %192 = vmatprep.subr.mxu0 0.0
    %193 = vmatpush1.msra.mxu0 0.0
    %194 = vmatprep.subr.mxu0 0.0
    %195 = vmatpush1.msra.mxu0 0.0
    %196 = vmatprep.subr.mxu0 0.0
    %197 = vmatpush1.msra.mxu0 0.0
    %198 = vmatprep.subr.mxu0 0.0
    %199 = vmatpush1.msra.mxu0 0.0
    %200 = vmatprep.subr.mxu0 0.0
    %201 = vmatpush1.msra.mxu0 0.0
    %202 = vmatprep.subr.mxu0 0.0
    %203 = vmatpush1.msra.mxu0 0.0
    %204 = vmatprep.subr.mxu0 0.0
    %205 = vmatpush1.msra.mxu0 0.0
    %206 = vmatprep.subr.mxu0 0.0
    %207 = vmatpush1.msra.mxu0 0.0
    %208 = vmatprep.mubr.f32.mxu0 0.0
    %209 = vmatmul.mubr.f32.gmra.mrb[0].mxu0 %v142
    %v210 = vpop.f32.mrb[0].mxu0
    %v211 = vadd.f32 %v138, %v210
    %v212 = vpop.f32.mrb[0].mxu0
    %213 = vdwg.mxu0
    %v214 = vmax.f32 %v211, 0.0
    %v215 = vld [vmem:[%s5] sm:$0xff]
    %v216 = vld [vmem:[%s5 + $0x8] sm:$0xff]
    %v217 = vld [vmem:[%s5 + $0x10] sm:$0xff]
    %v218 = vld [vmem:[%s5 + $0x18] sm:$0xff]
    %v219 = vld [vmem:[%s5 + $0x20] sm:$0xff]
    %v220 = vld [vmem:[%s5 + $0x28] sm:$0xff]
    %v221 = vld [vmem:[%s5 + $0x30] sm:$0xff]
    %v222 = vld [vmem:[%s5 + $0x38] sm:$0xff]
    %v223 = vld [vmem:[%s6] sm:$0x1]
    %v225 = vlaneseq
    %v226 = vshrl.u32 %v225, 7
    %v227 = vsub.s32 0, %v226
    %v228 = vrot.slane %v223, %v227
    %v231 = vsel %vm140, %v214, 0
    %233 = vmatprep.subr.mxu0 0.0
    %234 = vmatpush1.msra.mxu0 %v215
    %235 = vmatprep.subr.mxu0 0.0
    %236 = vmatpush1.msra.mxu0 %v216
    %237 = vmatprep.subr.mxu0 0.0
    %238 = vmatpush1.msra.mxu0 %v217
    %239 = vmatprep.subr.mxu0 0.0
    %240 = vmatpush1.msra.mxu0 %v218
    %241 = vmatprep.subr.mxu0 0.0
    %242 = vmatpush1.msra.mxu0 %v219
    %243 = vmatprep.subr.mxu0 0.0
    %244 = vmatpush1.msra.mxu0 %v220
    %245 = vmatprep.subr.mxu0 0.0
    %246 = vmatpush1.msra.mxu0 %v221
    %247 = vmatprep.subr.mxu0 0.0
    %248 = vmatpush1.msra.mxu0 %v222
    %249 = vmatprep.subr.mxu0 0.0
    %250 = vmatpush1.msra.mxu0 0.0
    %251 = vmatprep.subr.mxu0 0.0
    %252 = vmatpush1.msra.mxu0 0.0
    %253 = vmatprep.subr.mxu0 0.0
    %254 = vmatpush1.msra.mxu0 0.0
    %255 = vmatprep.subr.mxu0 0.0
    %256 = vmatpush1.msra.mxu0 0.0
    %257 = vmatprep.subr.mxu0 0.0
    %258 = vmatpush1.msra.mxu0 0.0
    %259 = vmatprep.subr.mxu0 0.0
    %260 = vmatpush1.msra.mxu0 0.0
    %261 = vmatprep.subr.mxu0 0.0
    %262 = vmatpush1.msra.mxu0 0.0
    %263 = vmatprep.subr.mxu0 0.0
    %264 = vmatpush1.msra.mxu0 0.0
    %265 = vmatprep.subr.mxu0 0.0
    %266 = vmatpush1.msra.mxu0 0.0
    %267 = vmatprep.subr.mxu0 0.0
    %268 = vmatpush1.msra.mxu0 0.0
    %269 = vmatprep.subr.mxu0 0.0
    %270 = vmatpush1.msra.mxu0 0.0
    %271 = vmatprep.subr.mxu0 0.0
    %272 = vmatpush1.msra.mxu0 0.0
    %273 = vmatprep.subr.mxu0 0.0
    %274 = vmatpush1.msra.mxu0 0.0
    %275 = vmatprep.subr.mxu0 0.0
    %276 = vmatpush1.msra.mxu0 0.0
    %277 = vmatprep.subr.mxu0 0.0
    %278 = vmatpush1.msra.mxu0 0.0
    %279 = vmatprep.subr.mxu0 0.0
    %280 = vmatpush1.msra.mxu0 0.0
    %281 = vmatprep.subr.mxu0 0.0
    %282 = vmatpush1.msra.mxu0 0.0
    %283 = vmatprep.subr.mxu0 0.0
    %284 = vmatpush1.msra.mxu0 0.0
    %285 = vmatprep.subr.mxu0 0.0
    %286 = vmatpush1.msra.mxu0 0.0
    %287 = vmatprep.subr.mxu0 0.0
    %288 = vmatpush1.msra.mxu0 0.0
    %289 = vmatprep.subr.mxu0 0.0
    %290 = vmatpush1.msra.mxu0 0.0
    %291 = vmatprep.subr.mxu0 0.0
    %292 = vmatpush1.msra.mxu0 0.0
    %293 = vmatprep.subr.mxu0 0.0
    %294 = vmatpush1.msra.mxu0 0.0
    %295 = vmatprep.subr.mxu0 0.0
    %296 = vmatpush1.msra.mxu0 0.0
    %297 = vmatprep.mubr.f32.mxu0 0.0
    %298 = vmatmul.mubr.f32.gmra.mrb[0].mxu0 %v231
    %v299 = vpop.f32.mrb[0].mxu0
    %v300 = vadd.f32 %v228, %v299
    %v301 = vpop.f32.mrb[0].mxu0
    %302 = vdwg.mxu0
    %vm303 = vcmask 31744
    %304 = vst.msk [vmem:[%s7] sm:$0xff] %vm303, %v300
    // Predicated region
    $region34: #{tpu_custom_call.1} parent=1 // pred_check
      _
    $region35: #{tpu_custom_call.1} parent=1 // pred_check_branch
      %306 = sbr.rel (0) target = $region37
    $region36: #{tpu_custom_call.1} parent=1 // pred_region
      _
    $region37: #{tpu_custom_call.1} parent=1 // pred_fallthru
      _
    // Predicated region
    $region38: #{tpu_custom_call.1} parent=1 // pred_check
      _
    $region39: #{tpu_custom_call.1} parent=1 // pred_check_branch
      %308 = sbr.rel (0) target = $region41
    $region40: #{tpu_custom_call.1} parent=1 // pred_region
      _
    $region41: #{tpu_custom_call.1} parent=1 // pred_fallthru
      _
    %309 = vsyncpa [#allocation3], 1

</llo_original>
